<compile_context>
chip_gen: v6e
topology: v6e:2x2x1
jax: 0.10.0
libtpu: 0.0.40
codegen_flags: <defaults>
</compile_context>

<pallas_src>
import functools

import jax
import jax.numpy as jnp
from jax.experimental import pallas as pl
from jax.experimental.pallas import tpu as pltpu

_SMOOTH = 1e-10


def _round_up(x, m):
    return (x + m - 1) // m * m


def _cdiv(a, b):
    return (a + b - 1) // b


def _evident_dice_stats_kernel(x_ref, t_ref, out_ref, stats_ref, *,
                               n_classes, tw, w_total, need_mask):
    """Per (batch, W-tile) partial Dice statistics.

    x_ref:     (C, H, TW)   alpha evidential params (f32 or bf16) in VMEM
    t_ref:     (H, TW)      int8 class labels in VMEM
    out_ref:   (4*C, 1)     f32 partial sums, rows per class ordered as
                            [intersection, sum(p*p), sum(onehot), var]
    stats_ref: (4*C, TW)    f32 VMEM scratch (per-column stats, reduced once)
    """
    # Single upcast of the int8 labels; all per-class compares run in int32.
    tgt = t_ref[...].astype(jnp.int32)                              # (H, TW)

    if need_mask:
        # Last W tile overhangs the array: zero the out-of-range lane columns
        # (jnp.where is NaN-safe against garbage in the OOB region).
        lane = jax.lax.broadcasted_iota(jnp.int32, (1, tw), 1)
        valid = (pl.program_id(1) * tw + lane) < w_total            # (1, TW)

    # n_classes is small (4-19): keep the loop statically unrolled.
    # TODO(synk): switch to lax.fori_loop over classes for very large C.
    for i in range(n_classes):
        alpha = x_ref[i, :, :].astype(jnp.float32)                  # (H, TW)
        match = tgt == i                                            # (H, TW)

        # Only raw-alpha H-reductions; p = alpha/S is never materialized.
        s = jnp.sum(alpha, axis=0, keepdims=True)                   # (1, TW)
        a2 = jnp.sum(alpha * alpha, axis=0, keepdims=True)          # (1, TW)
        ma = jnp.sum(jnp.where(match, alpha, 0.0), axis=0, keepdims=True)
        cnt = jnp.sum(match.astype(jnp.float32), axis=0, keepdims=True)

        inv_s = pl.reciprocal(s, approx=True)                       # EUP slot
        inter = ma * inv_s                                          # sum_h p*onehot
        p_sq = a2 * (inv_s * inv_s)                                 # sum_h p*p
        # alpha*(S-alpha)/(S^2*(S+1)) summed over H == (1 - sum_h p^2)/(S+1)
        # because sum_h p == 1 exactly for every (n, w) column.
        var = (1.0 - p_sq) * pl.reciprocal(s + 1.0, approx=True)

        if need_mask:
            inter = jnp.where(valid, inter, 0.0)
            p_sq = jnp.where(valid, p_sq, 0.0)
            cnt = jnp.where(valid, cnt, 0.0)
            var = jnp.where(valid, var, 0.0)

        # Row stores into VMEM scratch keep the live vreg set tiny.
        stats_ref[4 * i + 0:4 * i + 1, :] = inter
        stats_ref[4 * i + 1:4 * i + 2, :] = p_sq
        stats_ref[4 * i + 2:4 * i + 3, :] = cnt
        stats_ref[4 * i + 3:4 * i + 4, :] = var

    # Single cross-lane reduction per tile over all 4*C stat rows.
    out_ref[...] = jnp.sum(stats_ref[...], axis=-1, keepdims=True)  # (4*C, 1)


def evident_dice_loss(inputs, target, n_classes, weight=None, softmax=False):
    """JAX/Pallas port of evidentDiceLoss.forward. Returns a scalar loss."""
    assert inputs.shape[1] == n_classes, "predict & target shape do not match"
    n, c, h, w = inputs.shape
    assert target.shape == (n, h, w), "predict & target shape do not match"

    if softmax:
        # glue: only used when softmax=True (default path keeps raw alphas)
        inputs = jax.nn.softmax(inputs, axis=1)

    if weight is None:
        weight = [1.0] * n_classes
    weight = jnp.asarray(weight, dtype=jnp.float32)

    # bf16 inputs stay bf16 through the DMA (memory-bound at real sizes);
    # all in-kernel math is f32. Labels travel as int8 (classes <= 127).
    if inputs.dtype not in (jnp.dtype(jnp.bfloat16), jnp.dtype(jnp.float32)):
        inputs = inputs.astype(jnp.float32)
    tgt_dtype = jnp.int8 if n_classes <= 127 else jnp.int32
    target = target.astype(tgt_dtype)

    # ---- generation-aware lane-tile sizing --------------------------------
    try:
        vmem_cap = int(pltpu.get_tpu_info().vmem_capacity_bytes)
    except Exception:  # conservative fallback: v7x per-core VMEM
        vmem_cap = 64 * 1024 * 1024
    vmem_limit = int(vmem_cap * 0.7)        # ~90 MiB v5e/v6e, ~45 MiB v7x
    # Bytes per lane column: double-buffered input+target blocks, scratch row,
    # and ~4 H-tall f32 in-kernel temporaries.
    per_lane = (2 * (c * h * inputs.dtype.itemsize + h * target.dtype.itemsize)
                + 4 * c * 4 + 4 * h * 4)
    block_budget = int(vmem_limit * 0.6)
    tw_cap = max(128, min(32768, (block_budget // per_lane) // 128 * 128))

    if w <= tw_cap:
        tw = w                               # full-W block: any width allowed
        if n == 1 and w >= 256:
            # Keep >= 2 grid steps so both v7x TensorCores get work.
            tw = _round_up(_cdiv(w, 2), 128)
    else:
        tw = tw_cap                          # multiple of 128
    num_w_tiles = _cdiv(w, tw)
    need_mask = (num_w_tiles * tw != w)

    kernel = functools.partial(
        _evident_dice_stats_kernel,
        n_classes=n_classes, tw=tw, w_total=w, need_mask=need_mask)

    partial_stats = pl.pallas_call(
        kernel,
        out_shape=jax.ShapeDtypeStruct(
            (n, num_w_tiles, 4 * n_classes, 1), jnp.float32),
        grid=(n, num_w_tiles),
        in_specs=[
            # Native NCHW: batch dim squeezed, C and H whole, W tiled ->
            # no wrapper transpose; H stays the sublane axis.
            pl.BlockSpec((None, n_classes, h, tw),
                         lambda ni, wj: (ni, 0, 0, wj)),
            pl.BlockSpec((None, h, tw), lambda ni, wj: (ni, 0, wj)),
        ],
        out_specs=pl.BlockSpec((None, None, 4 * n_classes, 1),
                               lambda ni, wj: (ni, wj, 0, 0)),
        scratch_shapes=[pltpu.VMEM((4 * n_classes, tw), jnp.float32)],
        compiler_params=pltpu.CompilerParams(
            # Per-(batch, W-tile) outputs are independent -> both axes
            # parallel; shards across both v7x TensorCores.
            dimension_semantics=("parallel", "parallel"),
            vmem_limit_bytes=vmem_limit,
        ),
    )(inputs, target)

    # Tiny finalize in plain JAX: combine per-tile partials -> per-class Dice.
    stats = jnp.sum(partial_stats[..., 0], axis=(0, 1)).reshape(n_classes, 4)
    inter, p_sq, cnt, var = stats[:, 0], stats[:, 1], stats[:, 2], stats[:, 3]
    union = p_sq + cnt + _SMOOTH + var       # matches reference add order
    dice = inter / union
    loss = jnp.sum(dice * weight)
    return 1.0 - loss / n_classes * 2.0


if __name__ == "__main__":
    key = jax.random.PRNGKey(0)
    N, C, H, W = 2, 4, 16, 16
    k1, k2 = jax.random.split(key)
    # Evidential "alpha" parameters are positive (evidence + 1), so draw > 1.
    inputs = jax.random.uniform(k1, (N, C, H, W), dtype=jnp.float32) * 2.0 + 1.0
    target = jax.random.randint(k2, (N, H, W), 0, C, dtype=jnp.int32)

    loss = evident_dice_loss(inputs, target, n_classes=C)
    loss = jax.block_until_ready(loss)
    print("KERNEL_OK")
</pallas_src>

<mosaic_0001>
module attributes {stable_mosaic.version = 11 : i64} {
  func.func @_evident_dice_stats_kernel(%arg0: i32, %arg1: i32, %arg2: memref<1x4x16x16xf32, #tpu.memory_space<vmem>>, %arg3: memref<1x16x16xi8, #tpu.memory_space<vmem>>, %arg4: memref<1x1x16x1xf32, #tpu.memory_space<vmem>>, %arg5: memref<16x16xf32, #tpu.memory_space<vmem>>) attributes {dimension_semantics = [#tpu.dimension_semantics<parallel>, #tpu.dimension_semantics<parallel>], iteration_bounds = array<i64: 2, 1>, scalar_prefetch = 0 : i64, scratch_operands = 1 : i64, tpu.core_type = #tpu.core_type<tc>, window_params = [{transform_indices = @transform_0, window_bounds = array<i64: 1, 4, 16, 16>}, {transform_indices = @transform_1, window_bounds = array<i64: 1, 16, 16>}, {transform_indices = @transform_2, window_bounds = array<i64: 1, 1, 16, 1>}]} {
    %c0 = arith.constant 0 : index
    %c0_0 = arith.constant 0 : index
    %c0_1 = arith.constant 0 : index
    %0 = vector.load %arg3[%c0, %c0_0, %c0_1] : memref<1x16x16xi8, #tpu.memory_space<vmem>>, vector<1x16x16xi8>
    %1 = vector.shape_cast %0 : vector<1x16x16xi8> to vector<16x16xi8>
    %2 = arith.extsi %1 : vector<16x16xi8> to vector<16x16xi32>
    %c0_2 = arith.constant 0 : index
    %c0_3 = arith.constant 0 : index
    %c0_4 = arith.constant 0 : index
    %c0_5 = arith.constant 0 : index
    %3 = vector.load %arg2[%c0_2, %c0_3, %c0_4, %c0_5] : memref<1x4x16x16xf32, #tpu.memory_space<vmem>>, vector<1x1x16x16xf32>
    %4 = vector.shape_cast %3 : vector<1x1x16x16xf32> to vector<16x16xf32>
    %c0_i32 = arith.constant 0 : i32
    %5 = vector.broadcast %c0_i32 : i32 to vector<16x16xi32>
    %6 = arith.cmpi eq, %2, %5 : vector<16x16xi32>
    %cst = arith.constant dense<0.000000e+00> : vector<16xf32>
    %7 = vector.multi_reduction <add>, %4, %cst [0] : vector<16x16xf32> to vector<16xf32>
    %8 = vector.shape_cast %7 : vector<16xf32> to vector<1x16xf32>
    %9 = arith.mulf %4, %4 : vector<16x16xf32>
    %cst_6 = arith.constant dense<0.000000e+00> : vector<16xf32>
    %10 = vector.multi_reduction <add>, %9, %cst_6 [0] : vector<16x16xf32> to vector<16xf32>
    %11 = vector.shape_cast %10 : vector<16xf32> to vector<1x16xf32>
    %cst_7 = arith.constant 0.000000e+00 : f32
    %12 = vector.broadcast %cst_7 : f32 to vector<16x16xf32>
    %13 = arith.select %6, %4, %12 : vector<16x16xi1>, vector<16x16xf32>
    %cst_8 = arith.constant dense<0.000000e+00> : vector<16xf32>
    %14 = vector.multi_reduction <add>, %13, %cst_8 [0] : vector<16x16xf32> to vector<16xf32>
    %15 = vector.shape_cast %14 : vector<16xf32> to vector<1x16xf32>
    %16 = arith.extui %6 : vector<16x16xi1> to vector<16x16xi32>
    %17 = arith.sitofp %16 : vector<16x16xi32> to vector<16x16xf32>
    %cst_9 = arith.constant dense<0.000000e+00> : vector<16xf32>
    %18 = vector.multi_reduction <add>, %17, %cst_9 [0] : vector<16x16xf32> to vector<16xf32>
    %19 = vector.shape_cast %18 : vector<16xf32> to vector<1x16xf32>
    %20 = tpu.reciprocal %8 {approx = true} : vector<1x16xf32> -> vector<1x16xf32>
    %21 = arith.mulf %15, %20 : vector<1x16xf32>
    %22 = arith.mulf %20, %20 : vector<1x16xf32>
    %23 = arith.mulf %11, %22 : vector<1x16xf32>
    %cst_10 = arith.constant 1.000000e+00 : f32
    %24 = vector.broadcast %cst_10 : f32 to vector<1x16xf32>
    %25 = arith.subf %24, %23 : vector<1x16xf32>
    %cst_11 = arith.constant 1.000000e+00 : f32
    %26 = vector.broadcast %cst_11 : f32 to vector<1x16xf32>
    %27 = arith.addf %8, %26 : vector<1x16xf32>
    %28 = tpu.reciprocal %27 {approx = true} : vector<1x16xf32> -> vector<1x16xf32>
    %29 = arith.mulf %25, %28 : vector<1x16xf32>
    %c0_12 = arith.constant 0 : index
    %c0_13 = arith.constant 0 : index
    %30 = vector.load %arg5[%c0_12, %c0_13] : memref<16x16xf32, #tpu.memory_space<vmem>>, vector<1x16xf32>
    tpu.vector_store %arg5[%c0_12, %c0_13], %21 {strides = array<i32>} : memref<16x16xf32, #tpu.memory_space<vmem>>, vector<1x16xf32>,
    %c1 = arith.constant 1 : index
    %c0_14 = arith.constant 0 : index
    %31 = vector.load %arg5[%c1, %c0_14] : memref<16x16xf32, #tpu.memory_space<vmem>>, vector<1x16xf32>
    tpu.vector_store %arg5[%c1, %c0_14], %23 {strides = array<i32>} : memref<16x16xf32, #tpu.memory_space<vmem>>, vector<1x16xf32>,
    %c2 = arith.constant 2 : index
    %c0_15 = arith.constant 0 : index
    %32 = vector.load %arg5[%c2, %c0_15] : memref<16x16xf32, #tpu.memory_space<vmem>>, vector<1x16xf32>
    tpu.vector_store %arg5[%c2, %c0_15], %19 {strides = array<i32>} : memref<16x16xf32, #tpu.memory_space<vmem>>, vector<1x16xf32>,
    %c3 = arith.constant 3 : index
    %c0_16 = arith.constant 0 : index
    %33 = vector.load %arg5[%c3, %c0_16] : memref<16x16xf32, #tpu.memory_space<vmem>>, vector<1x16xf32>
    tpu.vector_store %arg5[%c3, %c0_16], %29 {strides = array<i32>} : memref<16x16xf32, #tpu.memory_space<vmem>>, vector<1x16xf32>,
    %c0_17 = arith.constant 0 : index
    %c1_18 = arith.constant 1 : index
    %c0_19 = arith.constant 0 : index
    %c0_20 = arith.constant 0 : index
    %34 = vector.load %arg2[%c0_17, %c1_18, %c0_19, %c0_20] : memref<1x4x16x16xf32, #tpu.memory_space<vmem>>, vector<1x1x16x16xf32>
    %35 = vector.shape_cast %34 : vector<1x1x16x16xf32> to vector<16x16xf32>
    %c1_i32 = arith.constant 1 : i32
    %36 = vector.broadcast %c1_i32 : i32 to vector<16x16xi32>
    %37 = arith.cmpi eq, %2, %36 : vector<16x16xi32>
    %cst_21 = arith.constant dense<0.000000e+00> : vector<16xf32>
    %38 = vector.multi_reduction <add>, %35, %cst_21 [0] : vector<16x16xf32> to vector<16xf32>
    %39 = vector.shape_cast %38 : vector<16xf32> to vector<1x16xf32>
    %40 = arith.mulf %35, %35 : vector<16x16xf32>
    %cst_22 = arith.constant dense<0.000000e+00> : vector<16xf32>
    %41 = vector.multi_reduction <add>, %40, %cst_22 [0] : vector<16x16xf32> to vector<16xf32>
    %42 = vector.shape_cast %41 : vector<16xf32> to vector<1x16xf32>
    %cst_23 = arith.constant 0.000000e+00 : f32
    %43 = vector.broadcast %cst_23 : f32 to vector<16x16xf32>
    %44 = arith.select %37, %35, %43 : vector<16x16xi1>, vector<16x16xf32>
    %cst_24 = arith.constant dense<0.000000e+00> : vector<16xf32>
    %45 = vector.multi_reduction <add>, %44, %cst_24 [0] : vector<16x16xf32> to vector<16xf32>
    %46 = vector.shape_cast %45 : vector<16xf32> to vector<1x16xf32>
    %47 = arith.extui %37 : vector<16x16xi1> to vector<16x16xi32>
    %48 = arith.sitofp %47 : vector<16x16xi32> to vector<16x16xf32>
    %cst_25 = arith.constant dense<0.000000e+00> : vector<16xf32>
    %49 = vector.multi_reduction <add>, %48, %cst_25 [0] : vector<16x16xf32> to vector<16xf32>
    %50 = vector.shape_cast %49 : vector<16xf32> to vector<1x16xf32>
    %51 = tpu.reciprocal %39 {approx = true} : vector<1x16xf32> -> vector<1x16xf32>
    %52 = arith.mulf %46, %51 : vector<1x16xf32>
    %53 = arith.mulf %51, %51 : vector<1x16xf32>
    %54 = arith.mulf %42, %53 : vector<1x16xf32>
    %cst_26 = arith.constant 1.000000e+00 : f32
    %55 = vector.broadcast %cst_26 : f32 to vector<1x16xf32>
    %56 = arith.subf %55, %54 : vector<1x16xf32>
    %cst_27 = arith.constant 1.000000e+00 : f32
    %57 = vector.broadcast %cst_27 : f32 to vector<1x16xf32>
    %58 = arith.addf %39, %57 : vector<1x16xf32>
    %59 = tpu.reciprocal %58 {approx = true} : vector<1x16xf32> -> vector<1x16xf32>
    %60 = arith.mulf %56, %59 : vector<1x16xf32>
    %c4 = arith.constant 4 : index
    %c0_28 = arith.constant 0 : index
    %61 = vector.load %arg5[%c4, %c0_28] : memref<16x16xf32, #tpu.memory_space<vmem>>, vector<1x16xf32>
    tpu.vector_store %arg5[%c4, %c0_28], %52 {strides = array<i32>} : memref<16x16xf32, #tpu.memory_space<vmem>>, vector<1x16xf32>,
    %c5 = arith.constant 5 : index
    %c0_29 = arith.constant 0 : index
    %62 = vector.load %arg5[%c5, %c0_29] : memref<16x16xf32, #tpu.memory_space<vmem>>, vector<1x16xf32>
    tpu.vector_store %arg5[%c5, %c0_29], %54 {strides = array<i32>} : memref<16x16xf32, #tpu.memory_space<vmem>>, vector<1x16xf32>,
    %c6 = arith.constant 6 : index
    %c0_30 = arith.constant 0 : index
    %63 = vector.load %arg5[%c6, %c0_30] : memref<16x16xf32, #tpu.memory_space<vmem>>, vector<1x16xf32>
    tpu.vector_store %arg5[%c6, %c0_30], %50 {strides = array<i32>} : memref<16x16xf32, #tpu.memory_space<vmem>>, vector<1x16xf32>,
    %c7 = arith.constant 7 : index
    %c0_31 = arith.constant 0 : index
    %64 = vector.load %arg5[%c7, %c0_31] : memref<16x16xf32, #tpu.memory_space<vmem>>, vector<1x16xf32>
    tpu.vector_store %arg5[%c7, %c0_31], %60 {strides = array<i32>} : memref<16x16xf32, #tpu.memory_space<vmem>>, vector<1x16xf32>,
    %c0_32 = arith.constant 0 : index
    %c2_33 = arith.constant 2 : index
    %c0_34 = arith.constant 0 : index
    %c0_35 = arith.constant 0 : index
    %65 = vector.load %arg2[%c0_32, %c2_33, %c0_34, %c0_35] : memref<1x4x16x16xf32, #tpu.memory_space<vmem>>, vector<1x1x16x16xf32>
    %66 = vector.shape_cast %65 : vector<1x1x16x16xf32> to vector<16x16xf32>
    %c2_i32 = arith.constant 2 : i32
    %67 = vector.broadcast %c2_i32 : i32 to vector<16x16xi32>
    %68 = arith.cmpi eq, %2, %67 : vector<16x16xi32>
    %cst_36 = arith.constant dense<0.000000e+00> : vector<16xf32>
    %69 = vector.multi_reduction <add>, %66, %cst_36 [0] : vector<16x16xf32> to vector<16xf32>
    %70 = vector.shape_cast %69 : vector<16xf32> to vector<1x16xf32>
    %71 = arith.mulf %66, %66 : vector<16x16xf32>
    %cst_37 = arith.constant dense<0.000000e+00> : vector<16xf32>
    %72 = vector.multi_reduction <add>, %71, %cst_37 [0] : vector<16x16xf32> to vector<16xf32>
    %73 = vector.shape_cast %72 : vector<16xf32> to vector<1x16xf32>
    %cst_38 = arith.constant 0.000000e+00 : f32
    %74 = vector.broadcast %cst_38 : f32 to vector<16x16xf32>
    %75 = arith.select %68, %66, %74 : vector<16x16xi1>, vector<16x16xf32>
    %cst_39 = arith.constant dense<0.000000e+00> : vector<16xf32>
    %76 = vector.multi_reduction <add>, %75, %cst_39 [0] : vector<16x16xf32> to vector<16xf32>
    %77 = vector.shape_cast %76 : vector<16xf32> to vector<1x16xf32>
    %78 = arith.extui %68 : vector<16x16xi1> to vector<16x16xi32>
    %79 = arith.sitofp %78 : vector<16x16xi32> to vector<16x16xf32>
    %cst_40 = arith.constant dense<0.000000e+00> : vector<16xf32>
    %80 = vector.multi_reduction <add>, %79, %cst_40 [0] : vector<16x16xf32> to vector<16xf32>
    %81 = vector.shape_cast %80 : vector<16xf32> to vector<1x16xf32>
    %82 = tpu.reciprocal %70 {approx = true} : vector<1x16xf32> -> vector<1x16xf32>
    %83 = arith.mulf %77, %82 : vector<1x16xf32>
    %84 = arith.mulf %82, %82 : vector<1x16xf32>
    %85 = arith.mulf %73, %84 : vector<1x16xf32>
    %cst_41 = arith.constant 1.000000e+00 : f32
    %86 = vector.broadcast %cst_41 : f32 to vector<1x16xf32>
    %87 = arith.subf %86, %85 : vector<1x16xf32>
    %cst_42 = arith.constant 1.000000e+00 : f32
    %88 = vector.broadcast %cst_42 : f32 to vector<1x16xf32>
    %89 = arith.addf %70, %88 : vector<1x16xf32>
    %90 = tpu.reciprocal %89 {approx = true} : vector<1x16xf32> -> vector<1x16xf32>
    %91 = arith.mulf %87, %90 : vector<1x16xf32>
    %c8 = arith.constant 8 : index
    %c0_43 = arith.constant 0 : index
    %92 = vector.load %arg5[%c8, %c0_43] : memref<16x16xf32, #tpu.memory_space<vmem>>, vector<1x16xf32>
    tpu.vector_store %arg5[%c8, %c0_43], %83 {strides = array<i32>} : memref<16x16xf32, #tpu.memory_space<vmem>>, vector<1x16xf32>,
    %c9 = arith.constant 9 : index
    %c0_44 = arith.constant 0 : index
    %93 = vector.load %arg5[%c9, %c0_44] : memref<16x16xf32, #tpu.memory_space<vmem>>, vector<1x16xf32>
    tpu.vector_store %arg5[%c9, %c0_44], %85 {strides = array<i32>} : memref<16x16xf32, #tpu.memory_space<vmem>>, vector<1x16xf32>,
    %c10 = arith.constant 10 : index
    %c0_45 = arith.constant 0 : index
    %94 = vector.load %arg5[%c10, %c0_45] : memref<16x16xf32, #tpu.memory_space<vmem>>, vector<1x16xf32>
    tpu.vector_store %arg5[%c10, %c0_45], %81 {strides = array<i32>} : memref<16x16xf32, #tpu.memory_space<vmem>>, vector<1x16xf32>,
    %c11 = arith.constant 11 : index
    %c0_46 = arith.constant 0 : index
    %95 = vector.load %arg5[%c11, %c0_46] : memref<16x16xf32, #tpu.memory_space<vmem>>, vector<1x16xf32>
    tpu.vector_store %arg5[%c11, %c0_46], %91 {strides = array<i32>} : memref<16x16xf32, #tpu.memory_space<vmem>>, vector<1x16xf32>,
    %c0_47 = arith.constant 0 : index
    %c3_48 = arith.constant 3 : index
    %c0_49 = arith.constant 0 : index
    %c0_50 = arith.constant 0 : index
    %96 = vector.load %arg2[%c0_47, %c3_48, %c0_49, %c0_50] : memref<1x4x16x16xf32, #tpu.memory_space<vmem>>, vector<1x1x16x16xf32>
    %97 = vector.shape_cast %96 : vector<1x1x16x16xf32> to vector<16x16xf32>
    %c3_i32 = arith.constant 3 : i32
    %98 = vector.broadcast %c3_i32 : i32 to vector<16x16xi32>
    %99 = arith.cmpi eq, %2, %98 : vector<16x16xi32>
    %cst_51 = arith.constant dense<0.000000e+00> : vector<16xf32>
    %100 = vector.multi_reduction <add>, %97, %cst_51 [0] : vector<16x16xf32> to vector<16xf32>
    %101 = vector.shape_cast %100 : vector<16xf32> to vector<1x16xf32>
    %102 = arith.mulf %97, %97 : vector<16x16xf32>
    %cst_52 = arith.constant dense<0.000000e+00> : vector<16xf32>
    %103 = vector.multi_reduction <add>, %102, %cst_52 [0] : vector<16x16xf32> to vector<16xf32>
    %104 = vector.shape_cast %103 : vector<16xf32> to vector<1x16xf32>
    %cst_53 = arith.constant 0.000000e+00 : f32
    %105 = vector.broadcast %cst_53 : f32 to vector<16x16xf32>
    %106 = arith.select %99, %97, %105 : vector<16x16xi1>, vector<16x16xf32>
    %cst_54 = arith.constant dense<0.000000e+00> : vector<16xf32>
    %107 = vector.multi_reduction <add>, %106, %cst_54 [0] : vector<16x16xf32> to vector<16xf32>
    %108 = vector.shape_cast %107 : vector<16xf32> to vector<1x16xf32>
    %109 = arith.extui %99 : vector<16x16xi1> to vector<16x16xi32>
    %110 = arith.sitofp %109 : vector<16x16xi32> to vector<16x16xf32>
    %cst_55 = arith.constant dense<0.000000e+00> : vector<16xf32>
    %111 = vector.multi_reduction <add>, %110, %cst_55 [0] : vector<16x16xf32> to vector<16xf32>
    %112 = vector.shape_cast %111 : vector<16xf32> to vector<1x16xf32>
    %113 = tpu.reciprocal %101 {approx = true} : vector<1x16xf32> -> vector<1x16xf32>
    %114 = arith.mulf %108, %113 : vector<1x16xf32>
    %115 = arith.mulf %113, %113 : vector<1x16xf32>
    %116 = arith.mulf %104, %115 : vector<1x16xf32>
    %cst_56 = arith.constant 1.000000e+00 : f32
    %117 = vector.broadcast %cst_56 : f32 to vector<1x16xf32>
    %118 = arith.subf %117, %116 : vector<1x16xf32>
    %cst_57 = arith.constant 1.000000e+00 : f32
    %119 = vector.broadcast %cst_57 : f32 to vector<1x16xf32>
    %120 = arith.addf %101, %119 : vector<1x16xf32>
    %121 = tpu.reciprocal %120 {approx = true} : vector<1x16xf32> -> vector<1x16xf32>
    %122 = arith.mulf %118, %121 : vector<1x16xf32>
    %c12 = arith.constant 12 : index
    %c0_58 = arith.constant 0 : index
    %123 = vector.load %arg5[%c12, %c0_58] : memref<16x16xf32, #tpu.memory_space<vmem>>, vector<1x16xf32>
    tpu.vector_store %arg5[%c12, %c0_58], %114 {strides = array<i32>} : memref<16x16xf32, #tpu.memory_space<vmem>>, vector<1x16xf32>,
    %c13 = arith.constant 13 : index
    %c0_59 = arith.constant 0 : index
    %124 = vector.load %arg5[%c13, %c0_59] : memref<16x16xf32, #tpu.memory_space<vmem>>, vector<1x16xf32>
    tpu.vector_store %arg5[%c13, %c0_59], %116 {strides = array<i32>} : memref<16x16xf32, #tpu.memory_space<vmem>>, vector<1x16xf32>,
    %c14 = arith.constant 14 : index
    %c0_60 = arith.constant 0 : index
    %125 = vector.load %arg5[%c14, %c0_60] : memref<16x16xf32, #tpu.memory_space<vmem>>, vector<1x16xf32>
    tpu.vector_store %arg5[%c14, %c0_60], %112 {strides = array<i32>} : memref<16x16xf32, #tpu.memory_space<vmem>>, vector<1x16xf32>,
    %c15 = arith.constant 15 : index
    %c0_61 = arith.constant 0 : index
    %126 = vector.load %arg5[%c15, %c0_61] : memref<16x16xf32, #tpu.memory_space<vmem>>, vector<1x16xf32>
    tpu.vector_store %arg5[%c15, %c0_61], %122 {strides = array<i32>} : memref<16x16xf32, #tpu.memory_space<vmem>>, vector<1x16xf32>,
    %c0_62 = arith.constant 0 : index
    %c0_63 = arith.constant 0 : index
    %127 = vector.load %arg5[%c0_62, %c0_63] : memref<16x16xf32, #tpu.memory_space<vmem>>, vector<16x16xf32>
    %cst_64 = arith.constant dense<0.000000e+00> : vector<16xf32>
    %128 = vector.multi_reduction <add>, %127, %cst_64 [1] : vector<16x16xf32> to vector<16xf32>
    %129 = vector.shape_cast %128 : vector<16xf32> to vector<16x1xf32>
    %c0_65 = arith.constant 0 : index
    %c0_66 = arith.constant 0 : index
    %c0_67 = arith.constant 0 : index
    %c0_68 = arith.constant 0 : index
    %130 = vector.load %arg4[%c0_65, %c0_66, %c0_67, %c0_68] : memref<1x1x16x1xf32, #tpu.memory_space<vmem>>, vector<1x1x16x1xf32>
    %131 = vector.shape_cast %130 : vector<1x1x16x1xf32> to vector<16x1xf32>
    %132 = vector.shape_cast %129 : vector<16x1xf32> to vector<1x1x16x1xf32>
    tpu.vector_store %arg4[%c0_65, %c0_66, %c0_67, %c0_68], %132 {strides = array<i32>} : memref<1x1x16x1xf32, #tpu.memory_space<vmem>>, vector<1x1x16x1xf32>,
    return
  }
  func.func @transform_0(%arg0: i32, %arg1: i32) -> (i32, i32, i32, i32) {
    %c0_i32 = arith.constant 0 : i32
    %c0_i32_0 = arith.constant 0 : i32
    %c0_i32_1 = arith.constant 0 : i32
    return %arg0, %c0_i32, %c0_i32_0, %arg1 : i32, i32, i32, i32
  }
  func.func @transform_1(%arg0: i32, %arg1: i32) -> (i32, i32, i32) {
    %c0_i32 = arith.constant 0 : i32
    %c0_i32_0 = arith.constant 0 : i32
    return %arg0, %c0_i32, %arg1 : i32, i32, i32
  }
  func.func @transform_2(%arg0: i32, %arg1: i32) -> (i32, i32, i32, i32) {
    %c0_i32 = arith.constant 0 : i32
    %c0_i32_0 = arith.constant 0 : i32
    %c0_i32_1 = arith.constant 0 : i32
    return %arg0, %arg1, %c0_i32, %c0_i32_0 : i32, i32, i32, i32
  }
}

</mosaic_0001>

<llo_original>
// kernel: tpu_custom_call.1
$region0: #{tpu_custom_call.1}
  #allocation0 [shape = 'u32[]', space=smem, size = 0x4, offset = 0x4, fixed_abs, tag = 'smem constant byte address 0x4 - core index']
  #allocation1 [shape = 'u32[144,128]{1,0:T(1,128)}', space=vmem, size = 0x12000, scoped, tag = 'internal scratch']
  #allocation2 [shape = 'f32[16,16]{1,0:T(8,128)}', space=vmem, size = 0x2000, scoped, tag = 'scratch operand']
  %s0 = inlined_call_operand.hbm [shape: f32[2,4,16,16], index: 0, kind: input, shape index: {}]
  %s1 = inlined_call_operand.hbm [shape: s8[2,16,16], index: 1, kind: input, shape index: {}]
  %s2 = inlined_call_operand.vmem [shape: f32[2,1,16,1], index: 2, kind: output, shape index: {}]
  %s3 = sld [smem:[#allocation0]]
  $region49: #{tpu_custom_call.1} parent=0
    _
  %s5 = ssub.s32 1, %s3
  %s6 = scalar_select 0, %s5, %s3
  $region1: #{tpu_custom_call.1} parent=0
    #allocation3 [shape = 'u8[65536]{0}', space=vmem, size = 0x10000, scoped, tag = 'input window, operand 0']
    #allocation4 [shape = 's32[2]{0}', space=sflag, size = 0x8, scoped, tag = 'scoped memory for tpu_custom_call.1']
    #allocation5 [shape = 'u8[4096]{0}', space=vmem, size = 0x1000, scoped, tag = 'input window, operand 1']
    #allocation6 [shape = 's32[2]{0}', space=sflag, size = 0x8, scoped, tag = 'scoped memory for tpu_custom_call.1']
    %7 = vsyncpa [#allocation4], 0
    %s8 = scalar_lea.sflag [#allocation4], 1
    %9 = vsyncpa %s8, 0
    %10 = vsyncpa [#allocation6], 0
    %s11 = scalar_lea.sflag [#allocation6], 1
    %12 = vsyncpa %s11, 0
    loop: start=0, step=1, limit=4
    $region2: #{tpu_custom_call.1} parent=1 // loop_pre_header
      _
    $region3: #{tpu_custom_call.1} parent=1 // loop_header
      %s14 = sphi 0, %s18
      %p15 = scmp.ge.s32.totalorder %s14, 4
      %s21 = sphi 0, %s33
      %s22 = sphi 0, %s29
      %s23 = sphi 0, %s21
      %s24 = sphi 0, %s22
      %s25 = sphi 0, %s23
      %s26 = sphi 0, %s24
      %s38 = sphi 0, %s40
      %s41 = sphi 0, %s38
      %s42 = sphi 0, %s41
      %s58 = sphi 0, %s42
      %s66 = sphi 0, %s68
      %s69 = sphi 0, %s66
      %s70 = sphi 0, %s69
      %s86 = sphi 0, %s70
      %s94 = sphi 0, %s96
      %s97 = sphi 0, %s94
      %s98 = sphi 0, %s97
      %s114 = sphi 0, %s98
    $region4: #{tpu_custom_call.1} parent=1 // loop_header_branch
      %17 = sbr.rel (%p15) target = $region8
    $region5: #{tpu_custom_call.1} parent=1 // loop_body
      %s19 = ssub.s32 %s14, 1
      %s20 = ssub.s32 %s14, 2
      %s27 = sadd.s32 1, %s22
      %p28 = scmp.ge.s32.totalorder %s27, 1
      %s29 = scalar_select %p28, 0, %s27
      %s30 = sadd.s32 1, %s21
      %s31 = scalar_select %p28, %s30, %s21
      %p32 = scmp.ge.s32.totalorder %s31, 2
      %s33 = scalar_select %p32, 0, %s31
      %s34 = ssub.s32 %s21, %s33
      %s35 = ssub.s32 %s22, %s29
      %s36 = sor.u32 %s34, %s35
      %p37 = scmp.eq.s32.totalorder %s36, 0
      %s39 = sadd.s32 %s38, 1
      %s40 = scalar_select %p37, %s38, %s39
      %p43 = pneg %p37
      %p44 = scmp.eq.s32.totalorder %s14, 1
      %p45 = por %p43, %p44
      %p46 = scmp.ne.s32.totalorder %s38, %s41
      %p47 = scmp.eq.s32.totalorder %s14, 0
      %p48 = por %p46, %p47
      %p49 = scmp.ne.s32.totalorder %s38, %s41
      %p50 = scmp.eq.s32.totalorder %s19, 1
      %p51 = por %p49, %p50
      %p52 = scmp.ne.s32.totalorder %s41, %s42
      %p53 = scmp.eq.s32.totalorder %s19, 0
      %p54 = por %p52, %p53
      %p55 = scmp.ne.s32.totalorder %s41, %s42
      %p56 = scmp.eq.s32.totalorder %s20, 1
      %p57 = por %p55, %p56
      %p59 = scmp.ne.s32.totalorder %s42, %s58
      %p60 = scmp.eq.s32.totalorder %s20, 0
      %p61 = por %p59, %p60
      %s62 = ssub.s32 %s21, %s33
      %s63 = ssub.s32 %s22, %s29
      %s64 = sor.u32 %s62, %s63
      %p65 = scmp.eq.s32.totalorder %s64, 0
      %s67 = sadd.s32 %s66, 1
      %s68 = scalar_select %p65, %s66, %s67
      %p71 = pneg %p65
      %p72 = scmp.eq.s32.totalorder %s14, 1
      %p73 = por %p71, %p72
      %p74 = scmp.ne.s32.totalorder %s66, %s69
      %p75 = scmp.eq.s32.totalorder %s14, 0
      %p76 = por %p74, %p75
      %p77 = scmp.ne.s32.totalorder %s66, %s69
      %p78 = scmp.eq.s32.totalorder %s19, 1
      %p79 = por %p77, %p78
      %p80 = scmp.ne.s32.totalorder %s69, %s70
      %p81 = scmp.eq.s32.totalorder %s19, 0
      %p82 = por %p80, %p81
      %p83 = scmp.ne.s32.totalorder %s69, %s70
      %p84 = scmp.eq.s32.totalorder %s20, 1
      %p85 = por %p83, %p84
      %p87 = scmp.ne.s32.totalorder %s70, %s86
      %p88 = scmp.eq.s32.totalorder %s20, 0
      %p89 = por %p87, %p88
      %s90 = ssub.s32 %s21, %s33
      %s91 = ssub.s32 %s22, %s29
      %s92 = sor.u32 %s90, %s91
      %p93 = scmp.eq.s32.totalorder %s92, 0
      %s95 = sadd.s32 %s94, 1
      %s96 = scalar_select %p93, %s94, %s95
      %p99 = pneg %p93
      %p100 = scmp.eq.s32.totalorder %s14, 1
      %p101 = por %p99, %p100
      %p102 = scmp.ne.s32.totalorder %s94, %s97
      %p103 = scmp.eq.s32.totalorder %s14, 0
      %p104 = por %p102, %p103
      %p105 = scmp.ne.s32.totalorder %s94, %s97
      %p106 = scmp.eq.s32.totalorder %s19, 1
      %p107 = por %p105, %p106
      %p108 = scmp.ne.s32.totalorder %s97, %s98
      %p109 = scmp.eq.s32.totalorder %s19, 0
      %p110 = por %p108, %p109
      %p111 = scmp.ne.s32.totalorder %s97, %s98
      %p112 = scmp.eq.s32.totalorder %s20, 1
      %p113 = por %p111, %p112
      %p115 = scmp.ne.s32.totalorder %s98, %s114
      %p116 = scmp.eq.s32.totalorder %s20, 0
      %p117 = por %p115, %p116
      %p118 = scmp.le.s32.totalorder 1, %s14
      %p119 = scmp.lt.s32.totalorder %s14, 3
      %p120 = pnand %p118, %p119
      %p121 = pneg %p120
      // Predicated region
      $region9: #{tpu_custom_call.1} parent=5 // pred_check
        _
      $region10: #{tpu_custom_call.1} parent=5 // pred_check_branch
        %123 = sbr.rel (%p120) target = $region12
      $region11: #{tpu_custom_call.1} parent=5 // pred_region
        %s124 = ssub.s32 %s14, 1
      $region12: #{tpu_custom_call.1} parent=5 // pred_fallthru
        _
      %p125 = scmp.lt.s32.totalorder %s14, 2
      // Predicated region
      $region13: #{tpu_custom_call.1} parent=5 // pred_check
        %p126 = pneg %p125
      $region14: #{tpu_custom_call.1} parent=5 // pred_check_branch
        %128 = sbr.rel (%p126) target = $region16
      $region15: #{tpu_custom_call.1} parent=5 // pred_region
        // Predicated region
        $region17: #{tpu_custom_call.1} parent=15 // pred_check
          %p129 = pneg %p48
        $region18: #{tpu_custom_call.1} parent=15 // pred_check_branch
          %131 = sbr.rel (%p129) target = $region20
        $region19: #{tpu_custom_call.1} parent=15 // pred_region
          %s132 = sand.u32 %s38, 1
          %s133 = scalar_lea.sflag [#allocation4], %s132
          %s134 = sand.u32 %s38, 1
          %s135 = smul.addr %s134, 64
          %s136 = scalar_lea.vmem [#allocation3], %s135
          %s138 = ssub.s32 1024, 1024
          %139 = vsyncadd %s133, %s138
          %s140 = smul.addr %s21, 8
          %s141 = sadd.s32 %s22, %s140
          %s142 = smul.addr %s141, 128
          %s143 = scalar_lea.hbm %s0, %s142
          %s144 = sshll.u32 %s136, 4
          %s145 = int_to_ptr.vmem [resolvable:$true] %s144
          %150 = dma.hbm_to_vmem [thread:$0]  %s143, 1024, %s145, %s133, 128, 128, 8
        $region20: #{tpu_custom_call.1} parent=15 // pred_fallthru
          _
        // Predicated region
        $region21: #{tpu_custom_call.1} parent=15 // pred_check
          %p151 = pneg %p76
        $region22: #{tpu_custom_call.1} parent=15 // pred_check_branch
          %153 = sbr.rel (%p151) target = $region24
        $region23: #{tpu_custom_call.1} parent=15 // pred_region
          %s154 = sand.u32 %s66, 1
          %s155 = scalar_lea.sflag [#allocation6], %s154
          %s156 = sand.u32 %s66, 1
          %s157 = smul.addr %s156, 4
          %s158 = scalar_lea.vmem [#allocation5], %s157
          %s160 = ssub.s32 64, 64
          %161 = vsyncadd %s155, %s160
          %s162 = smul.addr %s21, 2
          %s163 = sadd.s32 %s22, %s162
          %s164 = smul.addr %s163, 32
          %s165 = scalar_lea.hbm %s1, %s164
          %s166 = sshll.u32 %s158, 4
          %s167 = int_to_ptr.vmem [resolvable:$true] %s166
          %172 = dma.hbm_to_vmem [thread:$0]  %s165, 64, %s167, %s155, 32, 32, 2
        $region24: #{tpu_custom_call.1} parent=15 // pred_fallthru
          _
      $region16: #{tpu_custom_call.1} parent=5 // pred_fallthru
        _
      %p173 = scmp.le.s32.totalorder 1, %s14
      %p174 = scmp.lt.s32.totalorder %s14, 3
      %p175 = pnand %p173, %p174
      %p176 = pneg %p175
      // Predicated region
      $region25: #{tpu_custom_call.1} parent=5 // pred_check
        _
      $region26: #{tpu_custom_call.1} parent=5 // pred_check_branch
        %178 = sbr.rel (%p175) target = $region28
      $region27: #{tpu_custom_call.1} parent=5 // pred_region
        %s179 = ssub.s32 %s14, 1
        %s180 = sand.u32 %s41, 1
        %s181 = scalar_lea.sflag [#allocation4], %s180
        %s182 = sand.u32 %s41, 1
        %s183 = smul.addr %s182, 64
        %s184 = scalar_lea.vmem [#allocation3], %s183
        // Predicated region
        $region29: #{tpu_custom_call.1} parent=27 // pred_check
          %p185 = pneg %p54
        $region30: #{tpu_custom_call.1} parent=27 // pred_check_branch
          %187 = sbr.rel (%p185) target = $region32
        $region31: #{tpu_custom_call.1} parent=27 // pred_region
          %188 = dma.done %s181, 1024
        $region32: #{tpu_custom_call.1} parent=27 // pred_fallthru
          _
        %s189 = sand.u32 %s69, 1
        %s190 = scalar_lea.sflag [#allocation6], %s189
        %s191 = sand.u32 %s69, 1
        %s192 = smul.addr %s191, 4
        %s193 = scalar_lea.vmem [#allocation5], %s192
        // Predicated region
        $region33: #{tpu_custom_call.1} parent=27 // pred_check
          %p194 = pneg %p82
        $region34: #{tpu_custom_call.1} parent=27 // pred_check_branch
          %196 = sbr.rel (%p194) target = $region36
        $region35: #{tpu_custom_call.1} parent=27 // pred_region
          %197 = dma.done %s190, 64
        $region36: #{tpu_custom_call.1} parent=27 // pred_fallthru
          _
        %s198 = sand.u32 %s41, 1
        %s199 = scalar_lea.sflag [#allocation4], %s198
        %s200 = sand.u32 %s41, 1
        %s201 = smul.addr %s200, 64
        %s202 = scalar_lea.vmem [#allocation3], %s201
        %p203 = pneg %p54
        %p204 = pneg %p51
        %s205 = sand.u32 %s69, 1
        %s206 = scalar_lea.sflag [#allocation6], %s205
        %s207 = sand.u32 %s69, 1
        %s208 = smul.addr %s207, 4
        %s209 = scalar_lea.vmem [#allocation5], %s208
        %p210 = pneg %p82
        %p211 = pneg %p79
        %p212 = pneg %p110
        %p213 = pneg %p107
        %p214 = scmp.lt.s32.totalorder %s23, 1
        %s215 = scalar_select %p214, %s23, 1
        %p216 = scmp.lt.s32.totalorder %s24, 0
        %s217 = scalar_select %p216, %s24, 0
        %s218 = smul.addr %s217, 2
        %s219 = smul.addr %s215, 2
        %s220 = sadd.s32 %s218, %s219
        %s221 = smul.addr %s220, 8
        %s222 = scalar_lea.vmem %s2, %s221
        %p223 = scmp.lt.s32.totalorder %s23, 1
        %s224 = scalar_select %p223, %s23, 1
        %p225 = scmp.lt.s32.totalorder %s24, 0
        %s226 = scalar_select %p225, %s24, 0
        %s227 = smul.addr %s226, 2
        %s228 = smul.addr %s224, 2
        %s229 = sadd.s32 %s227, %s228
        %s230 = smul.addr %s229, 8
        %s231 = scalar_lea.vmem %s2, %s230
        %v232 = vld [vmem:[%s193] sm:$0x3]
        %v233 = vld [vmem:[%s193 + $0x2] sm:$0x3]
        %v234 = vunpack.c.0.s8 %v232
        %v235 = vunpack.c.0.s8 %v233
        %v236 = vld [vmem:[%s184] sm:$0xff]
        %v237 = vld [vmem:[%s184 + $0x8] sm:$0xff]
        %vm238 = vcmp.eq.s32.totalorder %v234, 0
        %vm239 = vcmp.eq.s32.totalorder %v235, 0
        %vm240 = vcmask 130048
        %v241 = vsel %vm240, %v236, 0.0
        %v242 = vsel %vm240, %v237, 0.0
        %v243 = vadd.f32 %v241, %v242
        %v244 = vrot.slane %v243, 4
        %v245 = vadd.f32 %v243, %v244
        %v246 = vrot.slane %v245, 2
        %v247 = vadd.f32 %v245, %v246
        %v248 = vrot.slane %v247, 1
        %v249 = vadd.f32 %v247, %v248
        %v250 = vmul.f32 %v236, %v236
        %v251 = vmul.f32 %v237, %v237
        %v252 = vsel %vm240, %v250, 0.0
        %v253 = vsel %vm240, %v251, 0.0
        %v254 = vadd.f32 %v252, %v253
        %v255 = vrot.slane %v254, 4
        %v256 = vadd.f32 %v254, %v255
        %v257 = vrot.slane %v256, 2
        %v258 = vadd.f32 %v256, %v257
        %v259 = vrot.slane %v258, 1
        %v260 = vadd.f32 %v258, %v259
        %v261 = vsel %vm238, %v236, 0.0
        %v262 = vsel %vm239, %v237, 0.0
        %v263 = vsel %vm240, %v261, 0.0
        %v264 = vsel %vm240, %v262, 0.0
        %v265 = vadd.f32 %v263, %v264
        %v266 = vrot.slane %v265, 4
        %v267 = vadd.f32 %v265, %v266
        %v268 = vrot.slane %v267, 2
        %v269 = vadd.f32 %v267, %v268
        %v270 = vrot.slane %v269, 1
        %v271 = vadd.f32 %v269, %v270
        %v272 = vsel %vm238, 1, 0
        %v273 = vsel %vm239, 1, 0
        %v274 = vcvt.s32.f32 %v272
        %v275 = vcvt.s32.f32 %v273
        %v276 = vsel %vm240, %v274, 0.0
        %v277 = vsel %vm240, %v275, 0.0
        %v278 = vadd.f32 %v276, %v277
        %v279 = vrot.slane %v278, 4
        %v280 = vadd.f32 %v278, %v279
        %v281 = vrot.slane %v280, 2
        %v282 = vadd.f32 %v280, %v281
        %v283 = vrot.slane %v282, 1
        %v284 = vadd.f32 %v282, %v283
        %v285 = vrcp.pop %v249
        %v286 = vmul.f32 %v271, %v285
        %v287 = vmul.f32 %v285, %v285
        %v288 = vmul.f32 %v260, %v287
        %v289 = vsub.f32 1.0, %v288
        %v290 = vadd.f32 %v249, 1.0
        %v291 = vrcp.pop %v290
        %v292 = vmul.f32 %v289, %v291
        %vm293 = vcmask 122880
        %294 = vst.msk [vmem:[#allocation2] sm:$0x1] %vm293, %v286
        %295 = vst.msk [vmem:[#allocation2 + $0x1] sm:$0x1] %vm293, %v288
        %296 = vst.msk [vmem:[#allocation2 + $0x2] sm:$0x1] %vm293, %v284
        %297 = vst.msk [vmem:[#allocation2 + $0x3] sm:$0x1] %vm293, %v292
        %s298 = scalar_lea.vmem %s184, 16 [#allocation3]
        %v299 = vld [vmem:[%s298] sm:$0xff]
        %v300 = vld [vmem:[%s298 + $0x8] sm:$0xff]
        %vm301 = vcmp.eq.s32.totalorder %v234, 1
        %vm302 = vcmp.eq.s32.totalorder %v235, 1
        %v303 = vsel %vm240, %v299, 0.0
        %v304 = vsel %vm240, %v300, 0.0
        %v305 = vadd.f32 %v303, %v304
        %v306 = vrot.slane %v305, 4
        %v307 = vadd.f32 %v305, %v306
        %v308 = vrot.slane %v307, 2
        %v309 = vadd.f32 %v307, %v308
        %v310 = vrot.slane %v309, 1
        %v311 = vadd.f32 %v309, %v310
        %v312 = vmul.f32 %v299, %v299
        %v313 = vmul.f32 %v300, %v300
        %v314 = vsel %vm240, %v312, 0.0
        %v315 = vsel %vm240, %v313, 0.0
        %v316 = vadd.f32 %v314, %v315
        %v317 = vrot.slane %v316, 4
        %v318 = vadd.f32 %v316, %v317
        %v319 = vrot.slane %v318, 2
        %v320 = vadd.f32 %v318, %v319
        %v321 = vrot.slane %v320, 1
        %v322 = vadd.f32 %v320, %v321
        %v323 = vsel %vm301, %v299, 0.0
        %v324 = vsel %vm302, %v300, 0.0
        %v325 = vsel %vm240, %v323, 0.0
        %v326 = vsel %vm240, %v324, 0.0
        %v327 = vadd.f32 %v325, %v326
        %v328 = vrot.slane %v327, 4
        %v329 = vadd.f32 %v327, %v328
        %v330 = vrot.slane %v329, 2
        %v331 = vadd.f32 %v329, %v330
        %v332 = vrot.slane %v331, 1
        %v333 = vadd.f32 %v331, %v332
        %v334 = vsel %vm301, 1, 0
        %v335 = vsel %vm302, 1, 0
        %v336 = vcvt.s32.f32 %v334
        %v337 = vcvt.s32.f32 %v335
        %v338 = vsel %vm240, %v336, 0.0
        %v339 = vsel %vm240, %v337, 0.0
        %v340 = vadd.f32 %v338, %v339
        %v341 = vrot.slane %v340, 4
        %v342 = vadd.f32 %v340, %v341
        %v343 = vrot.slane %v342, 2
        %v344 = vadd.f32 %v342, %v343
        %v345 = vrot.slane %v344, 1
        %v346 = vadd.f32 %v344, %v345
        %v347 = vrcp.pop %v311
        %v348 = vmul.f32 %v333, %v347
        %v349 = vmul.f32 %v347, %v347
        %v350 = vmul.f32 %v322, %v349
        %v351 = vsub.f32 1.0, %v350
        %v352 = vadd.f32 %v311, 1.0
        %v353 = vrcp.pop %v352
        %v354 = vmul.f32 %v351, %v353
        %355 = vst.msk [vmem:[#allocation2 + $0x4] sm:$0x1] %vm293, %v348
        %356 = vst.msk [vmem:[#allocation2 + $0x5] sm:$0x1] %vm293, %v350
        %357 = vst.msk [vmem:[#allocation2 + $0x6] sm:$0x1] %vm293, %v346
        %358 = vst.msk [vmem:[#allocation2 + $0x7] sm:$0x1] %vm293, %v354
        %s359 = scalar_lea.vmem %s184, 32 [#allocation3]
        %v360 = vld [vmem:[%s359] sm:$0xff]
        %v361 = vld [vmem:[%s359 + $0x8] sm:$0xff]
        %vm362 = vcmp.eq.s32.totalorder %v234, 2
        %vm363 = vcmp.eq.s32.totalorder %v235, 2
        %v364 = vsel %vm240, %v360, 0.0
        %v365 = vsel %vm240, %v361, 0.0
        %v366 = vadd.f32 %v364, %v365
        %v367 = vrot.slane %v366, 4
        %v368 = vadd.f32 %v366, %v367
        %v369 = vrot.slane %v368, 2
        %v370 = vadd.f32 %v368, %v369
        %v371 = vrot.slane %v370, 1
        %v372 = vadd.f32 %v370, %v371
        %v373 = vmul.f32 %v360, %v360
        %v374 = vmul.f32 %v361, %v361
        %v375 = vsel %vm240, %v373, 0.0
        %v376 = vsel %vm240, %v374, 0.0
        %v377 = vadd.f32 %v375, %v376
        %v378 = vrot.slane %v377, 4
        %v379 = vadd.f32 %v377, %v378
        %v380 = vrot.slane %v379, 2
        %v381 = vadd.f32 %v379, %v380
        %v382 = vrot.slane %v381, 1
        %v383 = vadd.f32 %v381, %v382
        %v384 = vsel %vm362, %v360, 0.0
        %v385 = vsel %vm363, %v361, 0.0
        %v386 = vsel %vm240, %v384, 0.0
        %v387 = vsel %vm240, %v385, 0.0
        %v388 = vadd.f32 %v386, %v387
        %v389 = vrot.slane %v388, 4
        %v390 = vadd.f32 %v388, %v389
        %v391 = vrot.slane %v390, 2
        %v392 = vadd.f32 %v390, %v391
        %v393 = vrot.slane %v392, 1
        %v394 = vadd.f32 %v392, %v393
        %v395 = vsel %vm362, 1, 0
        %v396 = vsel %vm363, 1, 0
        %v397 = vcvt.s32.f32 %v395
        %v398 = vcvt.s32.f32 %v396
        %v399 = vsel %vm240, %v397, 0.0
        %v400 = vsel %vm240, %v398, 0.0
        %v401 = vadd.f32 %v399, %v400
        %v402 = vrot.slane %v401, 4
        %v403 = vadd.f32 %v401, %v402
        %v404 = vrot.slane %v403, 2
        %v405 = vadd.f32 %v403, %v404
        %v406 = vrot.slane %v405, 1
        %v407 = vadd.f32 %v405, %v406
        %v408 = vrcp.pop %v372
        %v409 = vmul.f32 %v394, %v408
        %v410 = vmul.f32 %v408, %v408
        %v411 = vmul.f32 %v383, %v410
        %v412 = vsub.f32 1.0, %v411
        %v413 = vadd.f32 %v372, 1.0
        %v414 = vrcp.pop %v413
        %v415 = vmul.f32 %v412, %v414
        %416 = vst.msk [vmem:[#allocation2 + $0x8] sm:$0x1] %vm293, %v409
        %417 = vst.msk [vmem:[#allocation2 + $0x9] sm:$0x1] %vm293, %v411
        %418 = vst.msk [vmem:[#allocation2 + $0xa] sm:$0x1] %vm293, %v407
        %419 = vst.msk [vmem:[#allocation2 + $0xb] sm:$0x1] %vm293, %v415
        %s420 = scalar_lea.vmem %s184, 48 [#allocation3]
        %v421 = vld [vmem:[%s420] sm:$0xff]
        %v422 = vld [vmem:[%s420 + $0x8] sm:$0xff]
        %vm423 = vcmp.eq.s32.totalorder %v234, 3
        %vm424 = vcmp.eq.s32.totalorder %v235, 3
        %v425 = vsel %vm240, %v421, 0.0
        %v426 = vsel %vm240, %v422, 0.0
        %v427 = vadd.f32 %v425, %v426
        %v428 = vrot.slane %v427, 4
        %v429 = vadd.f32 %v427, %v428
        %v430 = vrot.slane %v429, 2
        %v431 = vadd.f32 %v429, %v430
        %v432 = vrot.slane %v431, 1
        %v433 = vadd.f32 %v431, %v432
        %v434 = vmul.f32 %v421, %v421
        %v435 = vmul.f32 %v422, %v422
        %v436 = vsel %vm240, %v434, 0.0
        %v437 = vsel %vm240, %v435, 0.0
        %v438 = vadd.f32 %v436, %v437
        %v439 = vrot.slane %v438, 4
        %v440 = vadd.f32 %v438, %v439
        %v441 = vrot.slane %v440, 2
        %v442 = vadd.f32 %v440, %v441
        %v443 = vrot.slane %v442, 1
        %v444 = vadd.f32 %v442, %v443
        %v445 = vsel %vm423, %v421, 0.0
        %v446 = vsel %vm424, %v422, 0.0
        %v447 = vsel %vm240, %v445, 0.0
        %v448 = vsel %vm240, %v446, 0.0
        %v449 = vadd.f32 %v447, %v448
        %v450 = vrot.slane %v449, 4
        %v451 = vadd.f32 %v449, %v450
        %v452 = vrot.slane %v451, 2
        %v453 = vadd.f32 %v451, %v452
        %v454 = vrot.slane %v453, 1
        %v455 = vadd.f32 %v453, %v454
        %v456 = vsel %vm423, 1, 0
        %v457 = vsel %vm424, 1, 0
        %v458 = vcvt.s32.f32 %v456
        %v459 = vcvt.s32.f32 %v457
        %v460 = vsel %vm240, %v458, 0.0
        %v461 = vsel %vm240, %v459, 0.0
        %v462 = vadd.f32 %v460, %v461
        %v463 = vrot.slane %v462, 4
        %v464 = vadd.f32 %v462, %v463
        %v465 = vrot.slane %v464, 2
        %v466 = vadd.f32 %v464, %v465
        %v467 = vrot.slane %v466, 1
        %v468 = vadd.f32 %v466, %v467
        %v469 = vrcp.pop %v433
        %v470 = vmul.f32 %v455, %v469
        %v471 = vmul.f32 %v469, %v469
        %v472 = vmul.f32 %v444, %v471
        %v473 = vsub.f32 1.0, %v472
        %v474 = vadd.f32 %v433, 1.0
        %v475 = vrcp.pop %v474
        %v476 = vmul.f32 %v473, %v475
        %477 = vst.msk [vmem:[#allocation2 + $0xc] sm:$0x1] %vm293, %v470
        %478 = vst.msk [vmem:[#allocation2 + $0xd] sm:$0x1] %vm293, %v472
        %479 = vst.msk [vmem:[#allocation2 + $0xe] sm:$0x1] %vm293, %v468
        %480 = vst.msk [vmem:[#allocation2 + $0xf] sm:$0x1] %vm293, %v476
        %v481 = vld [vmem:[#allocation2] sm:$0xff]
        %v482 = vld [vmem:[#allocation2 + $0x8] sm:$0xff]
        %v483 = vsel %vm240, %v481, 0.0
        %484 = vadd.xlane.f32.xlu0 %v483
        %v485 = vpop.xlane.xlu0 %484
        %v486 = vsel %vm240, %v482, 0.0
        %487 = vadd.xlane.f32.xlu0 %v486
        %v488 = vpop.xlane.xlu0 %487
        %vm489 = vcmask 7168
        %490 = vst.msk [vmem:[%s231] sm:$0xff] %vm489, %v485
        %491 = vst.msk [vmem:[%s231 + $0x8] sm:$0xff] %vm489, %v488
        %p492 = scmp.lt.s32.totalorder %s23, 1
        %s493 = scalar_select %p492, %s23, 1
        %p494 = scmp.lt.s32.totalorder %s24, 0
        %s495 = scalar_select %p494, %s24, 0
        %s496 = smul.addr %s495, 2
        %s497 = smul.addr %s493, 2
        %s498 = sadd.s32 %s496, %s497
        %s499 = smul.addr %s498, 8
        %s500 = scalar_lea.vmem %s2, %s499
        // Predicated region
        $region37: #{tpu_custom_call.1} parent=27 // pred_check
          %p501 = pneg %p107
        $region38: #{tpu_custom_call.1} parent=27 // pred_check_branch
          %503 = sbr.rel (%p501) target = $region40
        $region39: #{tpu_custom_call.1} parent=27 // pred_region
          _
        $region40: #{tpu_custom_call.1} parent=27 // pred_fallthru
          _
      $region28: #{tpu_custom_call.1} parent=5 // pred_fallthru
        _
      %p504 = scmp.le.s32.totalorder 2, %s14
      // Predicated region
      $region41: #{tpu_custom_call.1} parent=5 // pred_check
        %p505 = pneg %p504
      $region42: #{tpu_custom_call.1} parent=5 // pred_check_branch
        %507 = sbr.rel (%p505) target = $region44
      $region43: #{tpu_custom_call.1} parent=5 // pred_region
        %s508 = ssub.s32 %s14, 2
        // Predicated region
        $region45: #{tpu_custom_call.1} parent=43 // pred_check
          %p509 = pneg %p113
        $region46: #{tpu_custom_call.1} parent=43 // pred_check_branch
          %511 = sbr.rel (%p509) target = $region48
        $region47: #{tpu_custom_call.1} parent=43 // pred_region
          %p512 = scmp.lt.s32.totalorder %s25, 1
          %s513 = scalar_select %p512, %s25, 1
          %p514 = scmp.lt.s32.totalorder %s26, 0
          %s515 = scalar_select %p514, %s26, 0
          %s516 = smul.addr %s515, 2
          %s517 = smul.addr %s513, 2
          %s518 = sadd.s32 %s516, %s517
          %s519 = smul.addr %s518, 8
          %s520 = scalar_lea.vmem %s2, %s519
        $region48: #{tpu_custom_call.1} parent=43 // pred_fallthru
          _
      $region44: #{tpu_custom_call.1} parent=5 // pred_fallthru
        _
    $region6: #{tpu_custom_call.1} parent=1 // loop_footer
      %s18 = sadd.s32 1, %s14
    $region7: #{tpu_custom_call.1} parent=1 // loop_footer_branch
      %13 = sbr.rel target = $region3
    $region8: #{tpu_custom_call.1} parent=1 // loop_exit
      _
    %521 = vsyncpa [#allocation4], 1
    %s522 = scalar_lea.sflag [#allocation4], 1
    %523 = vsyncpa %s522, 1
    %524 = vsyncpa [#allocation6], 1
    %s525 = scalar_lea.sflag [#allocation6], 1
    %526 = vsyncpa %s525, 1

</llo_original>
